<compile_context>
chip_gen: v5e
topology: v5e:2x2
jax: 0.10.0
libtpu: 0.0.40
codegen_flags: <defaults>
</compile_context>

<pallas_src>
import functools

import jax
import jax.numpy as jnp
import numpy as np
from jax.experimental import pallas as pl
from jax.experimental.pallas import tpu as pltpu


# --------------------------------------------------------------------------- #
# Phase 1: time-parallel input projection (big GEMM, MXU-fed)
# --------------------------------------------------------------------------- #
def _input_proj_kernel(x_ref, w_ref, b_ref, o_ref):
    # (tm, I) @ (I, tn) + bias -> (tm, tn)
    o_ref[...] = (
        jnp.dot(x_ref[...], w_ref[...], preferred_element_type=jnp.float32)
        + b_ref[...]
    ).astype(o_ref.dtype)


# --------------------------------------------------------------------------- #
# Phase 2: serial recurrence, time-chunked, h/c persistent in VMEM scratch
# --------------------------------------------------------------------------- #
def _lstm_recurrence_kernel(gx_ref, whh_ref, out_ref, h_out_ref, c_out_ref,
                            h_sc, c_sc, *, seq_len, unroll):
    # gx_ref : (Tc, Bb, 4*Hp) precomputed x-projection + bias (time-major, gate-padded)
    # whh_ref: (Hp, 4*Hp)     recurrent weight (transposed, gate-padded)
    # out_ref: (Tc, Bb, Hp)   per-step hidden states (lane-dense)
    t_idx = pl.program_id(1)            # time-chunk axis (last grid axis)
    tc = gx_ref.shape[0]
    Hp = whh_ref.shape[0]

    @pl.when(t_idx == 0)
    def _():
        h_sc[...] = jnp.zeros_like(h_sc)
        c_sc[...] = jnp.zeros_like(c_sc)

    whh = whh_ref[...]                  # resident for the whole chunk

    def step(t, carry):
        h, c = carry
        # The small recurrent matmul is the only op on the serial critical path.
        gates = gx_ref[t] + jnp.dot(h.astype(whh.dtype), whh,
                                    preferred_element_type=jnp.float32)   # (Bb, 4*Hp)

        # Gate-major layout, each gate padded to a 128-lane boundary -> free views.
        i_g = jax.nn.sigmoid(gates[:, 0 * Hp:1 * Hp])
        f_g = jax.nn.sigmoid(gates[:, 1 * Hp:2 * Hp])
        g_g = jnp.tanh(gates[:, 2 * Hp:3 * Hp])
        o_g = jax.nn.sigmoid(gates[:, 3 * Hp:4 * Hp])

        c_new = f_g * c + i_g * g_g
        h_new = o_g * jnp.tanh(c_new)

        # Ragged last time chunk: don't advance the state past the real sequence.
        valid = (t_idx * tc + t) < seq_len
        h_new = jnp.where(valid, h_new, h)
        c_new = jnp.where(valid, c_new, c)

        out_ref[t] = h_new.astype(out_ref.dtype)   # lane-dense VMEM store (Hp % 128 == 0)
        return (h_new, c_new)

    h0 = h_sc[...]
    c0 = c_sc[...]
    hf, cf = jax.lax.fori_loop(0, tc, step, (h0, c0), unroll=unroll)

    # Persist the carry across time chunks; final-state outputs (same block each
    # chunk -> last write wins, written back once at grid end).
    h_sc[...] = hf
    c_sc[...] = cf
    h_out_ref[...] = hf.astype(h_out_ref.dtype)
    c_out_ref[...] = cf.astype(c_out_ref.dtype)


# --------------------------------------------------------------------------- #
# Helpers
# --------------------------------------------------------------------------- #
def _round_up(x, m):
    return (x + m - 1) // m * m


def _pick_batch_blocks(B):
    """Split batch across TensorCores on multi-TC chips (v7x) when alignment allows."""
    try:
        kind = jax.devices()[0].device_kind.lower()
    except Exception:
        return 1
    multi_tc = ("v7" in kind) or ("7x" in kind)
    if multi_tc and B % 2 == 0 and (B // 2) % 8 == 0:
        return 2
    return 1


def _pick_time_chunk(T, Bb, Hp, budget_bytes=6 * 1024 * 1024):
    """Largest time chunk whose double-buffered gx + out slabs fit the VMEM budget."""
    per_step = 2 * Bb * (4 * Hp + Hp) * 4       # 2 pipeline buffers, f32
    return int(max(1, min(T, budget_bytes // per_step)))


# --------------------------------------------------------------------------- #
# Forward
# --------------------------------------------------------------------------- #
def encoder_forward(x, w_ih, w_hh, b_ih, b_hh, *, matmul_dtype=jnp.float32):
    """x: (B, T, I) float32.  Returns (outputs (B,T,H), hidden (1,B,H), cell (1,B,H)).

    matmul_dtype=jnp.bfloat16 enables bf16 MXU operands (f32 accumulation) on
    v6e/v7x; kept f32 by default to match PyTorch f32 numerics exactly.
    """
    B, T, I = x.shape
    H4 = w_ih.shape[0]
    H = H4 // 4
    Hp = _round_up(H, 128)          # per-gate width padded to a lane boundary
    G4 = 4 * Hp

    # ---- parameter re-layout: gate-major, each gate zero-padded to Hp lanes ----
    wih_p = jnp.pad(w_ih.reshape(4, H, I), ((0, 0), (0, Hp - H), (0, 0)))
    wih_t = wih_p.transpose(2, 0, 1).reshape(I, G4).astype(matmul_dtype)     # (I, 4*Hp)

    whh_p = jnp.pad(w_hh.reshape(4, H, H), ((0, 0), (0, Hp - H), (0, Hp - H)))
    whh_t = whh_p.transpose(2, 0, 1).reshape(Hp, G4).astype(matmul_dtype)    # (Hp, 4*Hp)

    bias = jnp.pad((b_ih + b_hh).reshape(4, H), ((0, 0), (0, Hp - H)))
    bias = bias.reshape(1, G4).astype(jnp.float32)

    # ---- Phase 1: hoisted input projection, one large tiled GEMM over M = T*B ----
    # Time-major row order so the recurrence kernel indexes time on the leading dim.
    x_tm = jnp.transpose(x, (1, 0, 2)).reshape(T * B, I).astype(matmul_dtype)
    M = T * B
    tm = min(256, M)                # fixed tile; ragged last block handled by Pallas
    tn = min(256, G4)
    grid_m = pl.cdiv(M, tm)
    grid_n = pl.cdiv(G4, tn)

    gates_x = pl.pallas_call(
        _input_proj_kernel,
        out_shape=jax.ShapeDtypeStruct((M, G4), jnp.float32),
        grid_spec=pltpu.PrefetchScalarGridSpec(
            num_scalar_prefetch=0,
            grid=(grid_m, grid_n),
            in_specs=[
                pl.BlockSpec((tm, I), lambda i, j: (i, 0)),    # x rows
                pl.BlockSpec((I, tn), lambda i, j: (0, j)),    # W_ih^T column tile
                pl.BlockSpec((1, tn), lambda i, j: (0, j)),    # fused bias tile
            ],
            out_specs=pl.BlockSpec((tm, tn), lambda i, j: (i, j)),
        ),
        compiler_params=pltpu.CompilerParams(
            dimension_semantics=("parallel", "parallel"),
            vmem_limit_bytes=64 * 1024 * 1024,
        ),
    )(x_tm, wih_t, bias)

    gates_tbg = gates_x.reshape(T, B, G4)       # free reshape: rows are time-major

    # ---- Phase 2: serial recurrence, time-chunked streaming of gx / out ----------
    nb = _pick_batch_blocks(B)
    Bb = B // nb
    tc = _pick_time_chunk(T, Bb, Hp)
    nt = pl.cdiv(T, tc)
    unroll = 2 if tc % 2 == 0 else 1

    kernel = functools.partial(_lstm_recurrence_kernel, seq_len=T, unroll=unroll)

    outs_tbh, hidden, cell = pl.pallas_call(
        kernel,
        out_shape=(
            jax.ShapeDtypeStruct((T, B, Hp), x.dtype),
            jax.ShapeDtypeStruct((B, Hp), x.dtype),
            jax.ShapeDtypeStruct((B, Hp), x.dtype),
        ),
        grid_spec=pltpu.PrefetchScalarGridSpec(
            num_scalar_prefetch=0,
            grid=(nb, nt),
            in_specs=[
                pl.BlockSpec((tc, Bb, G4), lambda b, t: (t, b, 0)),   # gx time chunk
                pl.BlockSpec((Hp, G4), lambda b, t: (0, 0)),          # W_hh^T (resident)
            ],
            out_specs=[
                pl.BlockSpec((tc, Bb, Hp), lambda b, t: (t, b, 0)),   # hidden states
                pl.BlockSpec((Bb, Hp), lambda b, t: (b, 0)),          # final h
                pl.BlockSpec((Bb, Hp), lambda b, t: (b, 0)),          # final c
            ],
            scratch_shapes=[
                pltpu.VMEM((Bb, Hp), jnp.float32),   # h carry across chunks
                pltpu.VMEM((Bb, Hp), jnp.float32),   # c carry across chunks
            ],
        ),
        compiler_params=pltpu.CompilerParams(
            dimension_semantics=("parallel", "arbitrary"),
            vmem_limit_bytes=64 * 1024 * 1024,
        ),
    )(gates_tbg, whh_t)

    # Strip lane padding, return batch_first outputs; num_layers = 1.
    outputs = jnp.transpose(outs_tbh[:, :, :H], (1, 0, 2))
    return outputs, hidden[None, :, :H], cell[None, :, :H]


# --------------------------------------------------------------------------- #
# Pure-JAX reference (mirrors torch.nn.LSTM forward)
# --------------------------------------------------------------------------- #
def _reference_lstm(x, w_ih, w_hh, b_ih, b_hh):
    B, T, I = x.shape
    H = w_hh.shape[1]

    def step(carry, x_t):
        h, c = carry
        gates = x_t @ w_ih.T + b_ih + h @ w_hh.T + b_hh
        i = jax.nn.sigmoid(gates[:, 0 * H:1 * H])
        f = jax.nn.sigmoid(gates[:, 1 * H:2 * H])
        g = jnp.tanh(gates[:, 2 * H:3 * H])
        o = jax.nn.sigmoid(gates[:, 3 * H:4 * H])
        c = f * c + i * g
        h = o * jnp.tanh(c)
        return (h, c), h

    init = (jnp.zeros((B, H), x.dtype), jnp.zeros((B, H), x.dtype))
    (h_f, c_f), ys = jax.lax.scan(step, init, jnp.transpose(x, (1, 0, 2)))
    return jnp.transpose(ys, (1, 0, 2)), h_f[None], c_f[None]


if __name__ == "__main__":
    # Small shapes consistent with the module's forward (batch_first LSTM).
    B, T, I, H = 2, 8, 16, 32

    key = jax.random.PRNGKey(0)
    kx, k1, k2, k3, k4 = jax.random.split(key, 5)

    # PyTorch-style uniform(-1/sqrt(H), 1/sqrt(H)) init.
    bound = 1.0 / np.sqrt(H)
    w_ih = jax.random.uniform(k1, (4 * H, I), jnp.float32, -bound, bound)
    w_hh = jax.random.uniform(k2, (4 * H, H), jnp.float32, -bound, bound)
    b_ih = jax.random.uniform(k3, (4 * H,), jnp.float32, -bound, bound)
    b_hh = jax.random.uniform(k4, (4 * H,), jnp.float32, -bound, bound)

    x = jax.random.normal(kx, (B, T, I), jnp.float32)

    outputs, hidden, cell = jax.block_until_ready(
        encoder_forward(x, w_ih, w_hh, b_ih, b_hh))

    # Sanity check against pure-JAX reference.
    ro, rh, rc = _reference_lstm(x, w_ih, w_hh, b_ih, b_hh)
    assert outputs.shape == (B, T, H) and hidden.shape == (1, B, H) and cell.shape == (1, B, H)
    np.testing.assert_allclose(np.asarray(outputs), np.asarray(ro), atol=2e-5, rtol=2e-5)
    np.testing.assert_allclose(np.asarray(hidden), np.asarray(rh), atol=2e-5, rtol=2e-5)
    np.testing.assert_allclose(np.asarray(cell), np.asarray(rc), atol=2e-5, rtol=2e-5)

    print("KERNEL_OK")
</pallas_src>

<mosaic_0001>
module attributes {stable_mosaic.version = 11 : i64} {
  func.func @_input_proj_kernel(%arg0: i32, %arg1: i32, %arg2: memref<16x16xf32, #tpu.memory_space<vmem>>, %arg3: memref<16x256xf32, #tpu.memory_space<vmem>>, %arg4: memref<1x256xf32, #tpu.memory_space<vmem>>, %arg5: memref<16x256xf32, #tpu.memory_space<vmem>>) attributes {dimension_semantics = [#tpu.dimension_semantics<parallel>, #tpu.dimension_semantics<parallel>], iteration_bounds = array<i64: 1, 2>, scalar_prefetch = 0 : i64, scratch_operands = 0 : i64, tpu.core_type = #tpu.core_type<tc>, window_params = [{transform_indices = @transform_0, window_bounds = array<i64: 16, 16>}, {transform_indices = @transform_1, window_bounds = array<i64: 16, 256>}, {transform_indices = @transform_2, window_bounds = array<i64: 1, 256>}, {transform_indices = @transform_3, window_bounds = array<i64: 16, 256>}]} {
    %c0 = arith.constant 0 : index
    %c0_0 = arith.constant 0 : index
    %0 = vector.load %arg2[%c0, %c0_0] : memref<16x16xf32, #tpu.memory_space<vmem>>, vector<16x16xf32>
    %c0_1 = arith.constant 0 : index
    %c0_2 = arith.constant 0 : index
    %1 = vector.load %arg3[%c0_1, %c0_2] : memref<16x256xf32, #tpu.memory_space<vmem>>, vector<16x256xf32>
    %cst = arith.constant dense<0.000000e+00> : vector<16x256xf32>
    %2 = tpu.matmul %0, %1, %cst {dimension_numbers = #tpu.dot_dimension_numbers<[1], [0], [0], [1], [0, 0, 1, 1], [], []>} : vector<16x16xf32>, vector<16x256xf32>, vector<16x256xf32> -> vector<16x256xf32>
    %c0_3 = arith.constant 0 : index
    %c0_4 = arith.constant 0 : index
    %3 = vector.load %arg4[%c0_3, %c0_4] : memref<1x256xf32, #tpu.memory_space<vmem>>, vector<1x256xf32>
    %4 = vector.broadcast %3 : vector<1x256xf32> to vector<16x256xf32>
    %5 = arith.addf %2, %4 : vector<16x256xf32>
    %c0_5 = arith.constant 0 : index
    %c0_6 = arith.constant 0 : index
    %6 = vector.load %arg5[%c0_5, %c0_6] : memref<16x256xf32, #tpu.memory_space<vmem>>, vector<16x256xf32>
    tpu.vector_store %arg5[%c0_5, %c0_6], %5 {strides = array<i32>} : memref<16x256xf32, #tpu.memory_space<vmem>>, vector<16x256xf32>,
    return
  }
  func.func @transform_0(%arg0: i32, %arg1: i32) -> (i32, i32) {
    %c0_i32 = arith.constant 0 : i32
    %c0_i32_0 = arith.constant 0 : i32
    return %arg0, %c0_i32 : i32, i32
  }
  func.func @transform_1(%arg0: i32, %arg1: i32) -> (i32, i32) {
    %c0_i32 = arith.constant 0 : i32
    %c0_i32_0 = arith.constant 0 : i32
    return %c0_i32, %arg1 : i32, i32
  }
  func.func @transform_2(%arg0: i32, %arg1: i32) -> (i32, i32) {
    %c0_i32 = arith.constant 0 : i32
    %c0_i32_0 = arith.constant 0 : i32
    return %c0_i32, %arg1 : i32, i32
  }
  func.func @transform_3(%arg0: i32, %arg1: i32) -> (i32, i32) {
    %c0_i32 = arith.constant 0 : i32
    return %arg0, %arg1 : i32, i32
  }
}

</mosaic_0001>

<llo_original>
// kernel: tpu_custom_call.1
$region0: #{tpu_custom_call.1}
  #allocation0 [shape = 'u32[]', space=smem, size = 0x4, offset = 0x4, fixed_abs, tag = 'smem constant byte address 0x4 - core index']
  #allocation1 [shape = 'u32[72,128]{1,0:T(1,128)}', space=vmem, size = 0x9000, scoped, tag = 'internal scratch']
  %s0 = inlined_call_operand.hbm [shape: f32[16,16], index: 0, kind: input, shape index: {}]
  %s1 = inlined_call_operand.hbm [shape: f32[16,512], index: 1, kind: input, shape index: {}]
  %s2 = inlined_call_operand.hbm [shape: f32[1,512], index: 2, kind: input, shape index: {}]
  %s3 = inlined_call_operand.hbm [shape: f32[16,512], index: 3, kind: output, shape index: {}]
  %s4 = sld [smem:[#allocation0]]
  $region57: #{tpu_custom_call.1} parent=0
    _
  %s6 = ssub.s32 1, %s4
  %s7 = scalar_select 0, %s6, %s4
  $region1: #{tpu_custom_call.1} parent=0
    #allocation2 [shape = 'u8[8192]{0}', space=vmem, size = 0x2000, scoped, tag = 'input window, operand 0, single buffered']
    #allocation3 [shape = 's32[2]{0}', space=sflag, size = 0x8, scoped, tag = 'scoped memory for tpu_custom_call.1']
    #allocation4 [shape = 's32[2]{0}', space=sflag, size = 0x8, scoped, tag = 'scoped memory for tpu_custom_call.1']
    #allocation5 [shape = 'u8[32768]{0}', space=vmem, size = 0x8000, scoped, tag = 'input window, operand 1']
    #allocation6 [shape = 's32[2]{0}', space=sflag, size = 0x8, scoped, tag = 'scoped memory for tpu_custom_call.1']
    #allocation7 [shape = 'u8[2048]{0}', space=vmem, size = 0x800, scoped, tag = 'input window, operand 2']
    #allocation8 [shape = 'u8[32768]{0}', space=vmem, size = 0x8000, scoped, tag = 'output window, operand 0']
    %8 = vsyncpa [#allocation3], 0
    %9 = vsyncpa [#allocation6], 0
    %s10 = scalar_lea.sflag [#allocation6], 1
    %11 = vsyncpa %s10, 0
    %12 = vsyncpa [#allocation4], 0
    %s13 = scalar_lea.sflag [#allocation4], 1
    %14 = vsyncpa %s13, 0
    loop: start=0, step=1, limit=4
    $region2: #{tpu_custom_call.1} parent=1 // loop_pre_header
      _
    $region3: #{tpu_custom_call.1} parent=1 // loop_header
      %s16 = sphi 0, %s20
      %p17 = scmp.ge.s32.totalorder %s16, 4
      %s23 = sphi 0, %s35
      %s24 = sphi 0, %s31
      %s25 = sphi 0, %s23
      %s26 = sphi 0, %s24
      %s27 = sphi 0, %s25
      %s28 = sphi 0, %s26
      %s38 = sphi 0, %s40
      %s41 = sphi 0, %s38
      %s42 = sphi 0, %s41
      %s58 = sphi 0, %s42
      %s64 = sphi 0, %s66
      %s67 = sphi 0, %s64
      %s68 = sphi 0, %s67
      %s84 = sphi 0, %s68
      %s90 = sphi 0, %s92
      %s93 = sphi 0, %s90
      %s94 = sphi 0, %s93
      %s110 = sphi 0, %s94
      %s118 = sphi 0, %s120
      %s121 = sphi 0, %s118
      %s122 = sphi 0, %s121
      %s138 = sphi 0, %s122
    $region4: #{tpu_custom_call.1} parent=1 // loop_header_branch
      %19 = sbr.rel (%p17) target = $region8
    $region5: #{tpu_custom_call.1} parent=1 // loop_body
      %s21 = ssub.s32 %s16, 1
      %s22 = ssub.s32 %s16, 2
      %s29 = sadd.s32 1, %s24
      %p30 = scmp.ge.s32.totalorder %s29, 2
      %s31 = scalar_select %p30, 0, %s29
      %s32 = sadd.s32 1, %s23
      %s33 = scalar_select %p30, %s32, %s23
      %p34 = scmp.ge.s32.totalorder %s33, 1
      %s35 = scalar_select %p34, 0, %s33
      %s36 = ssub.s32 %s23, %s35
      %p37 = scmp.eq.s32.totalorder %s36, 0
      %s39 = sadd.s32 %s38, 1
      %s40 = scalar_select %p37, %s38, %s39
      %p43 = pneg %p37
      %p44 = scmp.eq.s32.totalorder %s16, 1
      %p45 = por %p43, %p44
      %p46 = scmp.ne.s32.totalorder %s38, %s41
      %p47 = scmp.eq.s32.totalorder %s16, 0
      %p48 = por %p46, %p47
      %p49 = scmp.ne.s32.totalorder %s38, %s41
      %p50 = scmp.eq.s32.totalorder %s21, 1
      %p51 = por %p49, %p50
      %p52 = scmp.ne.s32.totalorder %s41, %s42
      %p53 = scmp.eq.s32.totalorder %s21, 0
      %p54 = por %p52, %p53
      %p55 = scmp.ne.s32.totalorder %s41, %s42
      %p56 = scmp.eq.s32.totalorder %s22, 1
      %p57 = por %p55, %p56
      %p59 = scmp.ne.s32.totalorder %s42, %s58
      %p60 = scmp.eq.s32.totalorder %s22, 0
      %p61 = por %p59, %p60
      %s62 = ssub.s32 %s24, %s31
      %p63 = scmp.eq.s32.totalorder %s62, 0
      %s65 = sadd.s32 %s64, 1
      %s66 = scalar_select %p63, %s64, %s65
      %p69 = pneg %p63
      %p70 = scmp.eq.s32.totalorder %s16, 1
      %p71 = por %p69, %p70
      %p72 = scmp.ne.s32.totalorder %s64, %s67
      %p73 = scmp.eq.s32.totalorder %s16, 0
      %p74 = por %p72, %p73
      %p75 = scmp.ne.s32.totalorder %s64, %s67
      %p76 = scmp.eq.s32.totalorder %s21, 1
      %p77 = por %p75, %p76
      %p78 = scmp.ne.s32.totalorder %s67, %s68
      %p79 = scmp.eq.s32.totalorder %s21, 0
      %p80 = por %p78, %p79
      %p81 = scmp.ne.s32.totalorder %s67, %s68
      %p82 = scmp.eq.s32.totalorder %s22, 1
      %p83 = por %p81, %p82
      %p85 = scmp.ne.s32.totalorder %s68, %s84
      %p86 = scmp.eq.s32.totalorder %s22, 0
      %p87 = por %p85, %p86
      %s88 = ssub.s32 %s24, %s31
      %p89 = scmp.eq.s32.totalorder %s88, 0
      %s91 = sadd.s32 %s90, 1
      %s92 = scalar_select %p89, %s90, %s91
      %p95 = pneg %p89
      %p96 = scmp.eq.s32.totalorder %s16, 1
      %p97 = por %p95, %p96
      %p98 = scmp.ne.s32.totalorder %s90, %s93
      %p99 = scmp.eq.s32.totalorder %s16, 0
      %p100 = por %p98, %p99
      %p101 = scmp.ne.s32.totalorder %s90, %s93
      %p102 = scmp.eq.s32.totalorder %s21, 1
      %p103 = por %p101, %p102
      %p104 = scmp.ne.s32.totalorder %s93, %s94
      %p105 = scmp.eq.s32.totalorder %s21, 0
      %p106 = por %p104, %p105
      %p107 = scmp.ne.s32.totalorder %s93, %s94
      %p108 = scmp.eq.s32.totalorder %s22, 1
      %p109 = por %p107, %p108
      %p111 = scmp.ne.s32.totalorder %s94, %s110
      %p112 = scmp.eq.s32.totalorder %s22, 0
      %p113 = por %p111, %p112
      %s114 = ssub.s32 %s23, %s35
      %s115 = ssub.s32 %s24, %s31
      %s116 = sor.u32 %s114, %s115
      %p117 = scmp.eq.s32.totalorder %s116, 0
      %s119 = sadd.s32 %s118, 1
      %s120 = scalar_select %p117, %s118, %s119
      %p123 = pneg %p117
      %p124 = scmp.eq.s32.totalorder %s16, 1
      %p125 = por %p123, %p124
      %p126 = scmp.ne.s32.totalorder %s118, %s121
      %p127 = scmp.eq.s32.totalorder %s16, 0
      %p128 = por %p126, %p127
      %p129 = scmp.ne.s32.totalorder %s118, %s121
      %p130 = scmp.eq.s32.totalorder %s21, 1
      %p131 = por %p129, %p130
      %p132 = scmp.ne.s32.totalorder %s121, %s122
      %p133 = scmp.eq.s32.totalorder %s21, 0
      %p134 = por %p132, %p133
      %p135 = scmp.ne.s32.totalorder %s121, %s122
      %p136 = scmp.eq.s32.totalorder %s22, 1
      %p137 = por %p135, %p136
      %p139 = scmp.ne.s32.totalorder %s122, %s138
      %p140 = scmp.eq.s32.totalorder %s22, 0
      %p141 = por %p139, %p140
      %p142 = scmp.le.s32.totalorder 1, %s16
      %p143 = scmp.lt.s32.totalorder %s16, 3
      %p144 = pnand %p142, %p143
      %p145 = pneg %p144
      // Predicated region
      $region9: #{tpu_custom_call.1} parent=5 // pred_check
        _
      $region10: #{tpu_custom_call.1} parent=5 // pred_check_branch
        %147 = sbr.rel (%p144) target = $region12
      $region11: #{tpu_custom_call.1} parent=5 // pred_region
        %s148 = ssub.s32 %s16, 1
        // Predicated region
        $region13: #{tpu_custom_call.1} parent=11 // pred_check
          %p149 = pneg %p54
        $region14: #{tpu_custom_call.1} parent=11 // pred_check_branch
          %151 = sbr.rel (%p149) target = $region16
        $region15: #{tpu_custom_call.1} parent=11 // pred_region
          %s152 = smul.u32 2, %s25
          %154 = vsyncadd [#allocation3], 0
          %s155 = smul.addr %s152, 8
          %s156 = scalar_lea.hbm %s0, %s155
          %s157 = sshll.u32 %s156, 4
          %s158 = int_to_ptr.hbm [resolvable:$true] %s157
          %s159 = sshll.u32 [#allocation2], 4
          %s160 = int_to_ptr.vmem [resolvable:$true] %s159
          %165 = dma.hbm_to_vmem [thread:$0]  %s158, 256, %s160, [#allocation3], 128, 128, 8
        $region16: #{tpu_custom_call.1} parent=11 // pred_fallthru
          _
      $region12: #{tpu_custom_call.1} parent=5 // pred_fallthru
        _
      %p166 = scmp.lt.s32.totalorder %s16, 2
      // Predicated region
      $region17: #{tpu_custom_call.1} parent=5 // pred_check
        %p167 = pneg %p166
      $region18: #{tpu_custom_call.1} parent=5 // pred_check_branch
        %169 = sbr.rel (%p167) target = $region20
      $region19: #{tpu_custom_call.1} parent=5 // pred_region
        // Predicated region
        $region21: #{tpu_custom_call.1} parent=19 // pred_check
          %p170 = pneg %p74
        $region22: #{tpu_custom_call.1} parent=19 // pred_check_branch
          %172 = sbr.rel (%p170) target = $region24
        $region23: #{tpu_custom_call.1} parent=19 // pred_region
          %s173 = sand.u32 %s16, 1
          %s174 = scalar_lea.sflag [#allocation6], %s173
          %s175 = sand.u32 %s64, 1
          %s176 = smul.addr %s175, 32
          %s177 = scalar_lea.vmem [#allocation5], %s176
          %s178 = smul.u32 2, %s24
          %180 = vsyncadd %s174, 0
          %s181 = smul.addr %s178, 8
          %s182 = scalar_lea.hbm %s1, %s181
          %s183 = sshll.u32 %s182, 4
          %s184 = int_to_ptr.hbm [resolvable:$true] %s183
          %s185 = sshll.u32 %s177, 4
          %s186 = int_to_ptr.vmem [resolvable:$true] %s185
          %191 = dma.hbm_to_vmem [thread:$0]  %s184, 512, %s186, %s174, 512, 256, 16
        $region24: #{tpu_custom_call.1} parent=19 // pred_fallthru
          _
        // Predicated region
        $region25: #{tpu_custom_call.1} parent=19 // pred_check
          %p192 = pneg %p100
        $region26: #{tpu_custom_call.1} parent=19 // pred_check_branch
          %194 = sbr.rel (%p192) target = $region28
        $region27: #{tpu_custom_call.1} parent=19 // pred_region
          %s195 = sand.u32 %s16, 1
          %s196 = scalar_lea.sflag [#allocation6], %s195
          %s197 = sand.u32 %s90, 1
          %s198 = smul.addr %s197, 2
          %s199 = scalar_lea.vmem [#allocation7], %s198
          %s200 = smul.u32 2, %s24
          %202 = vsyncadd %s196, 0
          %s203 = scalar_lea.hbm %s2, %s200
          %s205 = sshll.u32 %s203, 4
          %s206 = int_to_ptr.hbm [resolvable:$true] %s205
          %s207 = sshll.u32 %s199, 4
          %s208 = int_to_ptr.vmem [resolvable:$true] %s207
          %210 = dma.hbm_to_vmem [thread:$0]  %s206, 32, %s208, %s196
        $region28: #{tpu_custom_call.1} parent=19 // pred_fallthru
          _
      $region20: #{tpu_custom_call.1} parent=5 // pred_fallthru
        _
      %p211 = scmp.le.s32.totalorder 1, %s16
      %p212 = scmp.lt.s32.totalorder %s16, 3
      %p213 = pnand %p211, %p212
      %p214 = pneg %p213
      // Predicated region
      $region29: #{tpu_custom_call.1} parent=5 // pred_check
        _
      $region30: #{tpu_custom_call.1} parent=5 // pred_check_branch
        %216 = sbr.rel (%p213) target = $region32
      $region31: #{tpu_custom_call.1} parent=5 // pred_region
        %s217 = ssub.s32 %s16, 1
        // Predicated region
        $region33: #{tpu_custom_call.1} parent=31 // pred_check
          %p218 = pneg %p54
        $region34: #{tpu_custom_call.1} parent=31 // pred_check_branch
          %220 = sbr.rel (%p218) target = $region36
        $region35: #{tpu_custom_call.1} parent=31 // pred_region
          %222 = dma.done [#allocation3], 256
        $region36: #{tpu_custom_call.1} parent=31 // pred_fallthru
          _
        %s223 = sand.u32 %s21, 1
        %s224 = scalar_lea.sflag [#allocation6], %s223
        %s225 = sand.u32 %s67, 1
        %s226 = smul.addr %s225, 32
        %s227 = scalar_lea.vmem [#allocation5], %s226
        // Predicated region
        $region37: #{tpu_custom_call.1} parent=31 // pred_check
          %p228 = pneg %p80
        $region38: #{tpu_custom_call.1} parent=31 // pred_check_branch
          %230 = sbr.rel (%p228) target = $region40
        $region39: #{tpu_custom_call.1} parent=31 // pred_region
          %232 = dma.done %s224, 512
        $region40: #{tpu_custom_call.1} parent=31 // pred_fallthru
          _
        %s233 = sand.u32 %s21, 1
        %s234 = scalar_lea.sflag [#allocation6], %s233
        %s235 = sand.u32 %s93, 1
        %s236 = smul.addr %s235, 2
        %s237 = scalar_lea.vmem [#allocation7], %s236
        // Predicated region
        $region41: #{tpu_custom_call.1} parent=31 // pred_check
          %p238 = pneg %p106
        $region42: #{tpu_custom_call.1} parent=31 // pred_check_branch
          %240 = sbr.rel (%p238) target = $region44
        $region43: #{tpu_custom_call.1} parent=31 // pred_region
          %242 = dma.done %s234, 32
        $region44: #{tpu_custom_call.1} parent=31 // pred_fallthru
          _
        %p243 = pneg %p54
        %p244 = pneg %p51
        %s245 = sand.u32 %s21, 1
        %s246 = scalar_lea.sflag [#allocation6], %s245
        %s247 = sand.u32 %s67, 1
        %s248 = smul.addr %s247, 32
        %s249 = scalar_lea.vmem [#allocation5], %s248
        %p250 = pneg %p80
        %p251 = pneg %p77
        %s252 = sand.u32 %s21, 1
        %s253 = scalar_lea.sflag [#allocation6], %s252
        %s254 = sand.u32 %s93, 1
        %s255 = smul.addr %s254, 2
        %s256 = scalar_lea.vmem [#allocation7], %s255
        %p257 = pneg %p106
        %p258 = pneg %p103
        %p259 = pneg %p134
        %p260 = pneg %p131
        %s261 = sand.u32 %s121, 1
        %s262 = scalar_lea.sflag [#allocation4], %s261
        %s263 = sand.u32 %s121, 1
        %s264 = smul.addr %s263, 32
        %s265 = scalar_lea.vmem [#allocation8], %s264
        %s266 = smul.u32 2, %s25
        %s267 = smul.u32 2, %s26
        %s268 = smul.u32 2, %s26
        %s269 = smul.u32 2, %s25
        %s270 = smul.u32 2, %s26
        %v271 = vld [vmem:[#allocation2] sm:$0xff]
        %v272 = vld [vmem:[#allocation2 + $0x8] sm:$0xff]
        %v273 = vld [vmem:[%s227] sm:$0xff]
        %v274 = vld [vmem:[%s227 + $0x8] sm:$0xff]
        %v275 = vld [vmem:[%s227 + $0x10] sm:$0xff]
        %v276 = vld [vmem:[%s227 + $0x18] sm:$0xff]
        %v277 = vld [vmem:[%s237] sm:$0x3]
        %v279 = vperm.slane %v277, 0
        %v280 = vperm.slane %v277, 1
        %vm283 = vcmask 130048
        %v285 = vsel %vm283, %v271, 0
        %v288 = vsel %vm283, %v272, 0
        %290 = vmatpush.msra.mxu0 0.0
        %291 = vmatpush.msra.mxu0 0.0
        %292 = vmatpush.msra.mxu0 0.0
        %293 = vmatpush.msra.mxu0 0.0
        %294 = vmatpush.msra.mxu0 0.0
        %295 = vmatpush.msra.mxu0 0.0
        %296 = vmatpush.msra.mxu0 0.0
        %297 = vmatpush.msra.mxu0 0.0
        %298 = vmatpush.msra.mxu0 0.0
        %299 = vmatpush.msra.mxu0 0.0
        %300 = vmatpush.msra.mxu0 0.0
        %301 = vmatpush.msra.mxu0 0.0
        %302 = vmatpush.msra.mxu0 0.0
        %303 = vmatpush.msra.mxu0 0.0
        %304 = vmatpush.msra.mxu0 %v275
        %305 = vmatpush.msra.mxu0 %v273
        %306 = vmatmul.f32.gmra.mxu0 %v285
        %v307 = vpop.f32.mrf.mxu0
        %v308 = vadd.f32 %v279, %v307
        %309 = vmatmul.f32.gmra.mxu0 %v288
        %v310 = vpop.f32.mrf.mxu0
        %v311 = vadd.f32 %v279, %v310
        %312 = vdwg.mxu0
        %313 = vmatpush.msra.mxu0 0.0
        %314 = vmatpush.msra.mxu0 0.0
        %315 = vmatpush.msra.mxu0 0.0
        %316 = vmatpush.msra.mxu0 0.0
        %317 = vmatpush.msra.mxu0 0.0
        %318 = vmatpush.msra.mxu0 0.0
        %319 = vmatpush.msra.mxu0 0.0
        %320 = vmatpush.msra.mxu0 0.0
        %321 = vmatpush.msra.mxu0 0.0
        %322 = vmatpush.msra.mxu0 0.0
        %323 = vmatpush.msra.mxu0 0.0
        %324 = vmatpush.msra.mxu0 0.0
        %325 = vmatpush.msra.mxu0 0.0
        %326 = vmatpush.msra.mxu0 0.0
        %327 = vmatpush.msra.mxu0 %v276
        %328 = vmatpush.msra.mxu0 %v274
        %329 = vmatmul.f32.gmra.mxu0 %v285
        %v330 = vpop.f32.mrf.mxu0
        %v331 = vadd.f32 %v280, %v330
        %332 = vmatmul.f32.gmra.mxu0 %v288
        %v333 = vpop.f32.mrf.mxu0
        %v334 = vadd.f32 %v280, %v333
        %335 = vdwg.mxu0
        %336 = vst [vmem:[%s265] sm:$0xff] %v308
        %337 = vst [vmem:[%s265 + $0x8] sm:$0xff] %v331
        %338 = vst [vmem:[%s265 + $0x10] sm:$0xff] %v311
        %339 = vst [vmem:[%s265 + $0x18] sm:$0xff] %v334
        %s340 = sand.u32 %s121, 1
        %s341 = scalar_lea.sflag [#allocation4], %s340
        %s342 = sand.u32 %s121, 1
        %s343 = smul.addr %s342, 32
        %s344 = scalar_lea.vmem [#allocation8], %s343
        // Predicated region
        $region45: #{tpu_custom_call.1} parent=31 // pred_check
          %p345 = pneg %p131
        $region46: #{tpu_custom_call.1} parent=31 // pred_check_branch
          %347 = sbr.rel (%p345) target = $region48
        $region47: #{tpu_custom_call.1} parent=31 // pred_region
          %s348 = smul.u32 2, %s25
          %s349 = smul.u32 2, %s26
          %351 = vsyncadd %s341, 0
          %s352 = smul.addr %s348, 4
          %s353 = sadd.s32 %s349, %s352
          %s354 = smul.addr %s353, 8
          %s355 = scalar_lea.hbm %s3, %s354
          %s356 = sshll.u32 %s344, 4
          %s357 = int_to_ptr.vmem [resolvable:$true] %s356
          %s358 = sshll.u32 %s355, 4
          %s359 = int_to_ptr.hbm [resolvable:$true] %s358
          %364 = dma.vmem_to_hbm [thread:$0]  %s357, 512, %s359, %s341, 256, 512, 16
        $region48: #{tpu_custom_call.1} parent=31 // pred_fallthru
          _
      $region32: #{tpu_custom_call.1} parent=5 // pred_fallthru
        _
      %p365 = scmp.le.s32.totalorder 2, %s16
      // Predicated region
      $region49: #{tpu_custom_call.1} parent=5 // pred_check
        %p366 = pneg %p365
      $region50: #{tpu_custom_call.1} parent=5 // pred_check_branch
        %368 = sbr.rel (%p366) target = $region52
      $region51: #{tpu_custom_call.1} parent=5 // pred_region
        %s369 = ssub.s32 %s16, 2
        // Predicated region
        $region53: #{tpu_custom_call.1} parent=51 // pred_check
          %p370 = pneg %p137
        $region54: #{tpu_custom_call.1} parent=51 // pred_check_branch
          %372 = sbr.rel (%p370) target = $region56
        $region55: #{tpu_custom_call.1} parent=51 // pred_region
          %s373 = sand.u32 %s122, 1
          %s374 = scalar_lea.sflag [#allocation4], %s373
          %s375 = sand.u32 %s122, 1
          %s376 = smul.addr %s375, 32
          %s377 = scalar_lea.vmem [#allocation8], %s376
          %379 = dma.done %s374, 512
        $region56: #{tpu_custom_call.1} parent=51 // pred_fallthru
          _
      $region52: #{tpu_custom_call.1} parent=5 // pred_fallthru
        _
    $region6: #{tpu_custom_call.1} parent=1 // loop_footer
      %s20 = sadd.s32 1, %s16
    $region7: #{tpu_custom_call.1} parent=1 // loop_footer_branch
      %15 = sbr.rel target = $region3
    $region8: #{tpu_custom_call.1} parent=1 // loop_exit
      _
    %380 = vsyncpa [#allocation3], 1
    %s381 = scalar_lea.sflag [#allocation3], 1
    %382 = vsyncpa %s381, 1
    %383 = vsyncpa [#allocation6], 1
    %s384 = scalar_lea.sflag [#allocation6], 1
    %385 = vsyncpa %s384, 1
    %386 = vsyncpa [#allocation4], 1
    %s387 = scalar_lea.sflag [#allocation4], 1
    %388 = vsyncpa %s387, 1

</llo_original>
